<compile_context>
chip_gen: v5e
topology: v5e:2x2
jax: 0.10.0
libtpu: 0.0.40
codegen_flags: <defaults>
</compile_context>

<pallas_src>
import math

import jax
import jax.numpy as jnp
from jax.experimental import pallas as pl
from jax.experimental.pallas import tpu as pltpu


def _round_up(n, m):
    return ((n + m - 1) // m) * m


def qnet_kernel(x_ref, w1_ref, b1_ref, w2_ref, b2_ref, o_ref):
    # Layer 1: bf16 MXU matmul (K-deep contraction at the logical input size),
    # f32 accumulation; bias + ReLU stay in f32 on the VPU.
    h = jnp.dot(x_ref[...], w1_ref[...], preferred_element_type=jnp.float32)
    h = jnp.maximum(h + b1_ref[...], 0.0)                   # (TB, Hp) + (1, Hp)
    # Layer 2: downcast hidden to bf16 only at the MXU input, accumulate in f32.
    out = jnp.dot(h.astype(jnp.bfloat16), w2_ref[...],
                  preferred_element_type=jnp.float32)
    o_ref[...] = (out + b2_ref[...]).astype(o_ref.dtype)    # lane-dense (TB, Op) store


def make_linear_qnet(w1, b1, w2, b2, *, out_dtype=jnp.float32, max_batch_tile=1024):
    """Build a jitted forward() for Linear_QNet.

    Weight/bias padding and bf16 casts are hoisted here (done once at init);
    the returned callable only casts x, runs one pallas_call, and de-pads.
    Zero padding keeps the math exact: padded hidden lanes get 0 contributions
    and 0 bias (so stay 0 through ReLU), padded output columns / batch rows
    are sliced off.
    """
    K, H = w1.shape
    O = w2.shape[1]
    # On v6e/v7x, pad to 256 instead if these dims ever become MXU-relevant;
    # at 32/4 the kernel is launch/HBM bound, so 128 (lane-dense) is enough.
    Hp = _round_up(H, 128)
    Op = _round_up(O, 128)

    w1p = jnp.pad(w1, ((0, 0), (0, Hp - H))).astype(jnp.bfloat16)        # (K, Hp)
    w2p = jnp.pad(w2, ((0, Hp - H), (0, Op - O))).astype(jnp.bfloat16)   # (Hp, Op)
    b1p = jnp.pad(b1.reshape(1, -1).astype(jnp.float32), ((0, 0), (0, Hp - H)))
    b2p = jnp.pad(b2.reshape(1, -1).astype(jnp.float32), ((0, 0), (0, Op - O)))

    vmem = pltpu.MemorySpace.VMEM

    def forward(x):
        B = x.shape[0]
        # One grid step for small batches (per-step overhead dominates this
        # kernel); only tile past max_batch_tile rows.  16-row granularity so
        # bf16 (16,128) vreg packing is full even for online (batch=1) calls.
        TB = _round_up(max(B, 1), 16) if B <= max_batch_tile else max_batch_tile
        B_pad = _round_up(B, TB)

        xp = x.astype(jnp.bfloat16)
        if B_pad != B:
            xp = jnp.pad(xp, ((0, B_pad - B), (0, 0)))       # batch-only pad

        flops = 2 * B * (K * H + H * O)                      # logical FLOPs
        bytes_accessed = (B_pad * K * 2                      # x (bf16)
                          + K * Hp * 2 + Hp * Op * 2         # weights (bf16)
                          + Hp * 4 + Op * 4                  # biases (f32)
                          + B_pad * Op * jnp.dtype(out_dtype).itemsize)

        out_pad = pl.pallas_call(
            qnet_kernel,
            out_shape=jax.ShapeDtypeStruct((B_pad, Op), out_dtype),
            grid=(B_pad // TB,),
            in_specs=[
                # x: (TB, K) tile -- K left at its logical size (full-extent
                # block dim), no 8x K padding of the activation stream.
                pl.BlockSpec((TB, K), lambda i: (i, 0), memory_space=vmem),
                # Weights / biases: full blocks, constant index_map -> VMEM
                # resident across every grid step.
                pl.BlockSpec((K, Hp), lambda i: (0, 0), memory_space=vmem),
                pl.BlockSpec((1, Hp), lambda i: (0, 0), memory_space=vmem),
                pl.BlockSpec((Hp, Op), lambda i: (0, 0), memory_space=vmem),
                pl.BlockSpec((1, Op), lambda i: (0, 0), memory_space=vmem),
            ],
            out_specs=pl.BlockSpec((TB, Op), lambda i: (i, 0), memory_space=vmem),
            compiler_params=pltpu.CompilerParams(
                # Batch axis is independent; we never shrink TB just to
                # manufacture grid steps for v7x's two TensorCores -- the split
                # only helps once the grid has several sizeable steps.
                dimension_semantics=("parallel",),
            ),
            cost_estimate=pl.CostEstimate(
                flops=flops, transcendentals=0, bytes_accessed=bytes_accessed),
        )(xp, w1p, b1p, w2p, b2p)

        # Batch / output de-padding; fuses with the consumer under jit.
        return out_pad[:B, :O]

    return jax.jit(forward)


def init_linear_params(key, fan_in, fan_out, dtype=jnp.float32):
    """Deterministic init matching torch.nn.Linear default: U(-1/sqrt(fan_in), 1/sqrt(fan_in))."""
    kw, kb = jax.random.split(key)
    bound = 1.0 / math.sqrt(fan_in)
    # Stored as (fan_in, fan_out) so the kernel computes x @ W (torch stores the transpose).
    w = jax.random.uniform(kw, (fan_in, fan_out), dtype, minval=-bound, maxval=bound)
    b = jax.random.uniform(kb, (fan_out,), dtype, minval=-bound, maxval=bound)
    return w, b


# TODO(synk): Linear_QNet.save() (torch.save of the state_dict) is host-side
# checkpoint I/O with no Pallas equivalent; only forward() is implemented.

if __name__ == "__main__":
    # Module config consistent with Linear_QNet(input_size, hidden_size, output_size).
    input_size, hidden_size, output_size = 16, 32, 4
    batch = 256  # fits in a single grid step now

    key = jax.random.PRNGKey(0)
    k_x, k_l1, k_l2 = jax.random.split(key, 3)

    x = jax.random.normal(k_x, (batch, input_size), jnp.float32)
    w1, b1 = init_linear_params(k_l1, input_size, hidden_size)
    w2, b2 = init_linear_params(k_l2, hidden_size, output_size)

    forward = make_linear_qnet(w1, b1, w2, b2)

    out = jax.block_until_ready(forward(x))
    assert out.shape == (batch, output_size)
    assert out.dtype == jnp.float32

    # Reference with the same bf16-input / f32-accumulate math as the kernel.
    xb, w1b, w2b = (a.astype(jnp.bfloat16) for a in (x, w1, w2))
    h_ref = jnp.maximum(
        jnp.dot(xb, w1b, preferred_element_type=jnp.float32) + b1, 0.0)
    ref_matched = jnp.dot(h_ref.astype(jnp.bfloat16), w2b,
                          preferred_element_type=jnp.float32) + b2
    assert jnp.allclose(out, ref_matched, atol=1e-2, rtol=1e-2)

    # Module-semantics reference in full f32 (loose tolerance for bf16 MXU inputs).
    ref_f32 = jnp.maximum(x @ w1 + b1, 0.0) @ w2 + b2
    assert jnp.allclose(out, ref_f32, atol=1e-1, rtol=1e-1)

    # Online-inference path (batch=1, as the Q-net is called per env step):
    # single 16-row grid step, same padded weights reused.
    out1 = jax.block_until_ready(forward(x[:1]))
    assert out1.shape == (1, output_size)
    assert jnp.allclose(out1, ref_f32[:1], atol=1e-1, rtol=1e-1)

    print("KERNEL_OK")
</pallas_src>

<mosaic_0001>
module attributes {stable_mosaic.version = 11 : i64} {
  func.func @qnet_kernel(%arg0: i32, %arg1: memref<256x16xbf16, #tpu.memory_space<vmem>>, %arg2: memref<16x128xbf16, #tpu.memory_space<vmem>>, %arg3: memref<1x128xf32, #tpu.memory_space<vmem>>, %arg4: memref<128x128xbf16, #tpu.memory_space<vmem>>, %arg5: memref<1x128xf32, #tpu.memory_space<vmem>>, %arg6: memref<256x128xf32, #tpu.memory_space<vmem>>) attributes {dimension_semantics = [#tpu.dimension_semantics<parallel>], iteration_bounds = array<i64: 1>, scalar_prefetch = 0 : i64, scratch_operands = 0 : i64, tpu.core_type = #tpu.core_type<tc>, window_params = [{transform_indices = @transform_0, window_bounds = array<i64: 256, 16>}, {pipeline_mode = #tpu.pipeline_mode<synchronous>, transform_indices = @transform_1, window_bounds = array<i64: 16, 128>}, {pipeline_mode = #tpu.pipeline_mode<synchronous>, transform_indices = @transform_2, window_bounds = array<i64: 1, 128>}, {pipeline_mode = #tpu.pipeline_mode<synchronous>, transform_indices = @transform_3, window_bounds = array<i64: 128, 128>}, {pipeline_mode = #tpu.pipeline_mode<synchronous>, transform_indices = @transform_4, window_bounds = array<i64: 1, 128>}, {transform_indices = @transform_5, window_bounds = array<i64: 256, 128>}]} {
    %c0 = arith.constant 0 : index
    %c0_0 = arith.constant 0 : index
    %0 = vector.load %arg1[%c0, %c0_0] : memref<256x16xbf16, #tpu.memory_space<vmem>>, vector<256x16xbf16>
    %c0_1 = arith.constant 0 : index
    %c0_2 = arith.constant 0 : index
    %1 = vector.load %arg2[%c0_1, %c0_2] : memref<16x128xbf16, #tpu.memory_space<vmem>>, vector<16x128xbf16>
    %cst = arith.constant dense<0.000000e+00> : vector<256x128xf32>
    %2 = tpu.matmul %0, %1, %cst {dimension_numbers = #tpu.dot_dimension_numbers<[1], [0], [0], [1], [0, 0, 1, 1], [], []>} : vector<256x16xbf16>, vector<16x128xbf16>, vector<256x128xf32> -> vector<256x128xf32>
    %c0_3 = arith.constant 0 : index
    %c0_4 = arith.constant 0 : index
    %3 = vector.load %arg3[%c0_3, %c0_4] : memref<1x128xf32, #tpu.memory_space<vmem>>, vector<1x128xf32>
    %4 = vector.broadcast %3 : vector<1x128xf32> to vector<256x128xf32>
    %5 = arith.addf %2, %4 : vector<256x128xf32>
    %cst_5 = arith.constant 0.000000e+00 : f32
    %6 = vector.broadcast %cst_5 : f32 to vector<256x128xf32>
    %7 = arith.maximumf %5, %6 : vector<256x128xf32>
    %8 = arith.truncf %7 : vector<256x128xf32> to vector<256x128xbf16>
    %c0_6 = arith.constant 0 : index
    %c0_7 = arith.constant 0 : index
    %9 = vector.load %arg4[%c0_6, %c0_7] : memref<128x128xbf16, #tpu.memory_space<vmem>>, vector<128x128xbf16>
    %cst_8 = arith.constant dense<0.000000e+00> : vector<256x128xf32>
    %10 = tpu.matmul %8, %9, %cst_8 {dimension_numbers = #tpu.dot_dimension_numbers<[1], [0], [0], [1], [0, 0, 1, 1], [], []>} : vector<256x128xbf16>, vector<128x128xbf16>, vector<256x128xf32> -> vector<256x128xf32>
    %c0_9 = arith.constant 0 : index
    %c0_10 = arith.constant 0 : index
    %11 = vector.load %arg5[%c0_9, %c0_10] : memref<1x128xf32, #tpu.memory_space<vmem>>, vector<1x128xf32>
    %12 = vector.broadcast %11 : vector<1x128xf32> to vector<256x128xf32>
    %13 = arith.addf %10, %12 : vector<256x128xf32>
    %c0_11 = arith.constant 0 : index
    %c0_12 = arith.constant 0 : index
    %14 = vector.load %arg6[%c0_11, %c0_12] : memref<256x128xf32, #tpu.memory_space<vmem>>, vector<256x128xf32>
    tpu.vector_store %arg6[%c0_11, %c0_12], %13 {strides = array<i32>} : memref<256x128xf32, #tpu.memory_space<vmem>>, vector<256x128xf32>,
    return
  }
  func.func @transform_0(%arg0: i32) -> (i32, i32) {
    %c0_i32 = arith.constant 0 : i32
    %c0_i32_0 = arith.constant 0 : i32
    return %arg0, %c0_i32 : i32, i32
  }
  func.func @transform_1(%arg0: i32) -> (i32, i32) {
    %c0_i32 = arith.constant 0 : i32
    %c0_i32_0 = arith.constant 0 : i32
    %c0_i32_1 = arith.constant 0 : i32
    return %c0_i32, %c0_i32_0 : i32, i32
  }
  func.func @transform_2(%arg0: i32) -> (i32, i32) {
    %c0_i32 = arith.constant 0 : i32
    %c0_i32_0 = arith.constant 0 : i32
    %c0_i32_1 = arith.constant 0 : i32
    return %c0_i32, %c0_i32_0 : i32, i32
  }
  func.func @transform_3(%arg0: i32) -> (i32, i32) {
    %c0_i32 = arith.constant 0 : i32
    %c0_i32_0 = arith.constant 0 : i32
    %c0_i32_1 = arith.constant 0 : i32
    return %c0_i32, %c0_i32_0 : i32, i32
  }
  func.func @transform_4(%arg0: i32) -> (i32, i32) {
    %c0_i32 = arith.constant 0 : i32
    %c0_i32_0 = arith.constant 0 : i32
    %c0_i32_1 = arith.constant 0 : i32
    return %c0_i32, %c0_i32_0 : i32, i32
  }
  func.func @transform_5(%arg0: i32) -> (i32, i32) {
    %c0_i32 = arith.constant 0 : i32
    %c0_i32_0 = arith.constant 0 : i32
    return %arg0, %c0_i32 : i32, i32
  }
}

</mosaic_0001>

<llo_original>
// kernel: forward.1
$region0: #{forward.1}
  #allocation0 [shape = 'u32[]', space=smem, size = 0x4, offset = 0x4, fixed_abs, tag = 'smem constant byte address 0x4 - core index']
  #allocation1 [shape = 'u32[72,128]{1,0:T(1,128)}', space=vmem, size = 0x9000, scoped, tag = 'internal scratch']
  %s0 = inlined_call_operand.vmem [shape: bf16[256,16], index: 0, kind: input, shape index: {}]
  %s1 = inlined_call_operand.vmem [shape: bf16[16,128], index: 1, kind: input, shape index: {}]
  %s2 = inlined_call_operand.vmem [shape: f32[1,128], index: 2, kind: input, shape index: {}]
  %s3 = inlined_call_operand.vmem [shape: bf16[128,128], index: 3, kind: input, shape index: {}]
  %s4 = inlined_call_operand.vmem [shape: f32[1,128], index: 4, kind: input, shape index: {}]
  %s5 = inlined_call_operand.vmem [shape: f32[256,128], index: 5, kind: output, shape index: {}]
  %s6 = sld [smem:[#allocation0]]
  $region30: #{forward.1} parent=0
    _
  %s8 = ssub.s32 1, %s6
  %s9 = scalar_select 0, %s8, %s6
  // Predicated region
  $region2: #{forward.1} parent=0 // pred_check
    _
  $region3: #{forward.1} parent=0 // pred_check_branch
    %11 = sbr.rel (0) target = $region5
  $region4: #{forward.1} parent=0 // pred_region
    _
  $region5: #{forward.1} parent=0 // pred_fallthru
    _
  // Predicated region
  $region6: #{forward.1} parent=0 // pred_check
    _
  $region7: #{forward.1} parent=0 // pred_check_branch
    %13 = sbr.rel (0) target = $region9
  $region8: #{forward.1} parent=0 // pred_region
    _
  $region9: #{forward.1} parent=0 // pred_fallthru
    _
  // Predicated region
  $region10: #{forward.1} parent=0 // pred_check
    _
  $region11: #{forward.1} parent=0 // pred_check_branch
    %15 = sbr.rel (0) target = $region13
  $region12: #{forward.1} parent=0 // pred_region
    _
  $region13: #{forward.1} parent=0 // pred_fallthru
    _
  // Predicated region
  $region14: #{forward.1} parent=0 // pred_check
    _
  $region15: #{forward.1} parent=0 // pred_check_branch
    %17 = sbr.rel (0) target = $region17
  $region16: #{forward.1} parent=0 // pred_region
    _
  $region17: #{forward.1} parent=0 // pred_fallthru
    _
  // Predicated region
  $region18: #{forward.1} parent=0 // pred_check
    _
  $region19: #{forward.1} parent=0 // pred_check_branch
    %19 = sbr.rel (0) target = $region21
  $region20: #{forward.1} parent=0 // pred_region
    _
  $region21: #{forward.1} parent=0 // pred_fallthru
    _
  %v21 = vld [vmem:[%s0] sm:$0xf]
  %v22 = vld [vmem:[%s0 + $0x4] sm:$0xf]
  %v23 = vld [vmem:[%s0 + $0x8] sm:$0xf]
  %v24 = vld [vmem:[%s0 + $0xc] sm:$0xf]
  %v25 = vld [vmem:[%s0 + $0x10] sm:$0xf]
  %v26 = vld [vmem:[%s0 + $0x14] sm:$0xf]
  %v27 = vld [vmem:[%s0 + $0x18] sm:$0xf]
  %v28 = vld [vmem:[%s0 + $0x1c] sm:$0xf]
  %v29 = vld [vmem:[%s0 + $0x20] sm:$0xf]
  %v30 = vld [vmem:[%s0 + $0x24] sm:$0xf]
  %v31 = vld [vmem:[%s0 + $0x28] sm:$0xf]
  %v32 = vld [vmem:[%s0 + $0x2c] sm:$0xf]
  %v33 = vld [vmem:[%s0 + $0x30] sm:$0xf]
  %v34 = vld [vmem:[%s0 + $0x34] sm:$0xf]
  %v35 = vld [vmem:[%s0 + $0x38] sm:$0xf]
  %v36 = vld [vmem:[%s0 + $0x3c] sm:$0xf]
  %v37 = vld [vmem:[%s0 + $0x40] sm:$0xf]
  %v38 = vld [vmem:[%s0 + $0x44] sm:$0xf]
  %v39 = vld [vmem:[%s0 + $0x48] sm:$0xf]
  %v40 = vld [vmem:[%s0 + $0x4c] sm:$0xf]
  %v41 = vld [vmem:[%s0 + $0x50] sm:$0xf]
  %v42 = vld [vmem:[%s0 + $0x54] sm:$0xf]
  %v43 = vld [vmem:[%s0 + $0x58] sm:$0xf]
  %v44 = vld [vmem:[%s0 + $0x5c] sm:$0xf]
  %v45 = vld [vmem:[%s0 + $0x60] sm:$0xf]
  %v46 = vld [vmem:[%s0 + $0x64] sm:$0xf]
  %v47 = vld [vmem:[%s0 + $0x68] sm:$0xf]
  %v48 = vld [vmem:[%s0 + $0x6c] sm:$0xf]
  %v49 = vld [vmem:[%s0 + $0x70] sm:$0xf]
  %v50 = vld [vmem:[%s0 + $0x74] sm:$0xf]
  %v51 = vld [vmem:[%s0 + $0x78] sm:$0xf]
  %v52 = vld [vmem:[%s0 + $0x7c] sm:$0xf]
  %v53 = vld [vmem:[%s1] sm:$0xf]
  %v54 = vld [vmem:[%s1 + $0x4] sm:$0xf]
  %v55 = vld [vmem:[%s2] sm:$0x1]
  %v57 = vperm.slane %v55, 0
  %v91 = vunpack.c.l.b16 %v21
  %v92 = vunpack.c.l.b16 %v22
  %v93 = vunpack.c.l.b16 %v23
  %v94 = vunpack.c.l.b16 %v24
  %v95 = vunpack.c.l.b16 %v25
  %v96 = vunpack.c.l.b16 %v26
  %v97 = vunpack.c.l.b16 %v27
  %v98 = vunpack.c.l.b16 %v28
  %v99 = vunpack.c.l.b16 %v29
  %v100 = vunpack.c.l.b16 %v30
  %v101 = vunpack.c.l.b16 %v31
  %v102 = vunpack.c.l.b16 %v32
  %v103 = vunpack.c.l.b16 %v33
  %v104 = vunpack.c.l.b16 %v34
  %v105 = vunpack.c.l.b16 %v35
  %v106 = vunpack.c.l.b16 %v36
  %v107 = vunpack.c.l.b16 %v37
  %v108 = vunpack.c.l.b16 %v38
  %v109 = vunpack.c.l.b16 %v39
  %v110 = vunpack.c.l.b16 %v40
  %v111 = vunpack.c.l.b16 %v41
  %v112 = vunpack.c.l.b16 %v42
  %v113 = vunpack.c.l.b16 %v43
  %v114 = vunpack.c.l.b16 %v44
  %v115 = vunpack.c.l.b16 %v45
  %v116 = vunpack.c.l.b16 %v46
  %v117 = vunpack.c.l.b16 %v47
  %v118 = vunpack.c.l.b16 %v48
  %v119 = vunpack.c.l.b16 %v49
  %v120 = vunpack.c.l.b16 %v50
  %v121 = vunpack.c.l.b16 %v51
  %v122 = vunpack.c.l.b16 %v52
  %v123 = vpack.c.b16 %v92, %v91
  %v124 = vpack.c.b16 %v94, %v93
  %v125 = vpack.c.b16 %v96, %v95
  %v126 = vpack.c.b16 %v98, %v97
  %v127 = vpack.c.b16 %v100, %v99
  %v128 = vpack.c.b16 %v102, %v101
  %v129 = vpack.c.b16 %v104, %v103
  %v130 = vpack.c.b16 %v106, %v105
  %v131 = vpack.c.b16 %v108, %v107
  %v132 = vpack.c.b16 %v110, %v109
  %v133 = vpack.c.b16 %v112, %v111
  %v134 = vpack.c.b16 %v114, %v113
  %v135 = vpack.c.b16 %v116, %v115
  %v136 = vpack.c.b16 %v118, %v117
  %v137 = vpack.c.b16 %v120, %v119
  %v138 = vpack.c.b16 %v122, %v121
  %v141 = vunpack.c.l.b16 %v53
  %v142 = vunpack.c.l.b16 %v54
  %v143 = vpack.c.b16 %v142, %v141
  %vm145 = vcmask 130048
  %v147 = vsel %vm145, %v123, 0
  %v150 = vsel %vm145, %v124, 0
  %v153 = vsel %vm145, %v125, 0
  %v156 = vsel %vm145, %v126, 0
  %v159 = vsel %vm145, %v127, 0
  %v162 = vsel %vm145, %v128, 0
  %v165 = vsel %vm145, %v129, 0
  %v168 = vsel %vm145, %v130, 0
  %v171 = vsel %vm145, %v131, 0
  %v174 = vsel %vm145, %v132, 0
  %v177 = vsel %vm145, %v133, 0
  %v180 = vsel %vm145, %v134, 0
  %v183 = vsel %vm145, %v135, 0
  %v186 = vsel %vm145, %v136, 0
  %v189 = vsel %vm145, %v137, 0
  %v192 = vsel %vm145, %v138, 0
  %194 = vmatpush.bf16.msra.mxu0 0
  %195 = vmatpush.bf16.msra.mxu0 0
  %196 = vmatpush.bf16.msra.mxu0 0
  %197 = vmatpush.bf16.msra.mxu0 0
  %198 = vmatpush.bf16.msra.mxu0 0
  %199 = vmatpush.bf16.msra.mxu0 0
  %200 = vmatpush.bf16.msra.mxu0 0
  %201 = vmatpush.bf16.msra.mxu0 %v143
  %202 = vmatmul.bf16.gmra.mxu0 %v147
  %v203 = vpop.f32.mrf.mxu0
  %v204 = vadd.f32 %v57, %v203
  %v205 = vpop.f32.mrf.mxu0
  %v206 = vadd.f32 %v57, %v205
  %207 = vmatmul.bf16.gmra.mxu0 %v150
  %v208 = vpop.f32.mrf.mxu0
  %v209 = vadd.f32 %v57, %v208
  %v210 = vpop.f32.mrf.mxu0
  %v211 = vadd.f32 %v57, %v210
  %212 = vmatmul.bf16.gmra.mxu0 %v153
  %v213 = vpop.f32.mrf.mxu0
  %v214 = vadd.f32 %v57, %v213
  %v215 = vpop.f32.mrf.mxu0
  %v216 = vadd.f32 %v57, %v215
  %217 = vmatmul.bf16.gmra.mxu0 %v156
  %v218 = vpop.f32.mrf.mxu0
  %v219 = vadd.f32 %v57, %v218
  %v220 = vpop.f32.mrf.mxu0
  %v221 = vadd.f32 %v57, %v220
  %222 = vmatmul.bf16.gmra.mxu0 %v159
  %v223 = vpop.f32.mrf.mxu0
  %v224 = vadd.f32 %v57, %v223
  %v225 = vpop.f32.mrf.mxu0
  %v226 = vadd.f32 %v57, %v225
  %227 = vmatmul.bf16.gmra.mxu0 %v162
  %v228 = vpop.f32.mrf.mxu0
  %v229 = vadd.f32 %v57, %v228
  %v230 = vpop.f32.mrf.mxu0
  %v231 = vadd.f32 %v57, %v230
  %232 = vmatmul.bf16.gmra.mxu0 %v165
  %v233 = vpop.f32.mrf.mxu0
  %v234 = vadd.f32 %v57, %v233
  %v235 = vpop.f32.mrf.mxu0
  %v236 = vadd.f32 %v57, %v235
  %237 = vmatmul.bf16.gmra.mxu0 %v168
  %v238 = vpop.f32.mrf.mxu0
  %v239 = vadd.f32 %v57, %v238
  %v240 = vpop.f32.mrf.mxu0
  %v241 = vadd.f32 %v57, %v240
  %242 = vmatmul.bf16.gmra.mxu0 %v171
  %v243 = vpop.f32.mrf.mxu0
  %v244 = vadd.f32 %v57, %v243
  %v245 = vpop.f32.mrf.mxu0
  %v246 = vadd.f32 %v57, %v245
  %247 = vmatmul.bf16.gmra.mxu0 %v174
  %v248 = vpop.f32.mrf.mxu0
  %v249 = vadd.f32 %v57, %v248
  %v250 = vpop.f32.mrf.mxu0
  %v251 = vadd.f32 %v57, %v250
  %252 = vmatmul.bf16.gmra.mxu0 %v177
  %v253 = vpop.f32.mrf.mxu0
  %v254 = vadd.f32 %v57, %v253
  %v255 = vpop.f32.mrf.mxu0
  %v256 = vadd.f32 %v57, %v255
  %257 = vmatmul.bf16.gmra.mxu0 %v180
  %v258 = vpop.f32.mrf.mxu0
  %v259 = vadd.f32 %v57, %v258
  %v260 = vpop.f32.mrf.mxu0
  %v261 = vadd.f32 %v57, %v260
  %262 = vmatmul.bf16.gmra.mxu0 %v183
  %v263 = vpop.f32.mrf.mxu0
  %v264 = vadd.f32 %v57, %v263
  %v265 = vpop.f32.mrf.mxu0
  %v266 = vadd.f32 %v57, %v265
  %267 = vmatmul.bf16.gmra.mxu0 %v186
  %v268 = vpop.f32.mrf.mxu0
  %v269 = vadd.f32 %v57, %v268
  %v270 = vpop.f32.mrf.mxu0
  %v271 = vadd.f32 %v57, %v270
  %272 = vmatmul.bf16.gmra.mxu0 %v189
  %v273 = vpop.f32.mrf.mxu0
  %v274 = vadd.f32 %v57, %v273
  %v275 = vpop.f32.mrf.mxu0
  %v276 = vadd.f32 %v57, %v275
  %277 = vmatmul.bf16.gmra.mxu0 %v192
  %v278 = vpop.f32.mrf.mxu0
  %v279 = vadd.f32 %v57, %v278
  %v280 = vpop.f32.mrf.mxu0
  %v281 = vadd.f32 %v57, %v280
  %282 = vdwg.mxu0
  %v283 = vmax.f32 %v204, 0.0
  %v284 = vmax.f32 %v206, 0.0
  %v285 = vmax.f32 %v209, 0.0
  %v286 = vmax.f32 %v211, 0.0
  %v287 = vmax.f32 %v214, 0.0
  %v288 = vmax.f32 %v216, 0.0
  %v289 = vmax.f32 %v219, 0.0
  %v290 = vmax.f32 %v221, 0.0
  %v291 = vmax.f32 %v224, 0.0
  %v292 = vmax.f32 %v226, 0.0
  %v293 = vmax.f32 %v229, 0.0
  %v294 = vmax.f32 %v231, 0.0
  %v295 = vmax.f32 %v234, 0.0
  %v296 = vmax.f32 %v236, 0.0
  %v297 = vmax.f32 %v239, 0.0
  %v298 = vmax.f32 %v241, 0.0
  %v299 = vmax.f32 %v244, 0.0
  %v300 = vmax.f32 %v246, 0.0
  %v301 = vmax.f32 %v249, 0.0
  %v302 = vmax.f32 %v251, 0.0
  %v303 = vmax.f32 %v254, 0.0
  %v304 = vmax.f32 %v256, 0.0
  %v305 = vmax.f32 %v259, 0.0
  %v306 = vmax.f32 %v261, 0.0
  %v307 = vmax.f32 %v264, 0.0
  %v308 = vmax.f32 %v266, 0.0
  %v309 = vmax.f32 %v269, 0.0
  %v310 = vmax.f32 %v271, 0.0
  %v311 = vmax.f32 %v274, 0.0
  %v312 = vmax.f32 %v276, 0.0
  %v313 = vmax.f32 %v279, 0.0
  %v314 = vmax.f32 %v281, 0.0
  %v315 = vpack.c.bf16 %v284, %v283
  %v316 = vpack.c.bf16 %v286, %v285
  %v317 = vpack.c.bf16 %v288, %v287
  %v318 = vpack.c.bf16 %v290, %v289
  %v319 = vpack.c.bf16 %v292, %v291
  %v320 = vpack.c.bf16 %v294, %v293
  %v321 = vpack.c.bf16 %v296, %v295
  %v322 = vpack.c.bf16 %v298, %v297
  %v323 = vpack.c.bf16 %v300, %v299
  %v324 = vpack.c.bf16 %v302, %v301
  %v325 = vpack.c.bf16 %v304, %v303
  %v326 = vpack.c.bf16 %v306, %v305
  %v327 = vpack.c.bf16 %v308, %v307
  %v328 = vpack.c.bf16 %v310, %v309
  %v329 = vpack.c.bf16 %v312, %v311
  %v330 = vpack.c.bf16 %v314, %v313
  %v331 = vld [vmem:[%s3] sm:$0xf]
  %v332 = vld [vmem:[%s3 + $0x4] sm:$0xf]
  %v333 = vld [vmem:[%s3 + $0x8] sm:$0xf]
  %v334 = vld [vmem:[%s3 + $0xc] sm:$0xf]
  %v335 = vld [vmem:[%s3 + $0x10] sm:$0xf]
  %v336 = vld [vmem:[%s3 + $0x14] sm:$0xf]
  %v337 = vld [vmem:[%s3 + $0x18] sm:$0xf]
  %v338 = vld [vmem:[%s3 + $0x1c] sm:$0xf]
  %v339 = vld [vmem:[%s3 + $0x20] sm:$0xf]
  %v340 = vld [vmem:[%s3 + $0x24] sm:$0xf]
  %v341 = vld [vmem:[%s3 + $0x28] sm:$0xf]
  %v342 = vld [vmem:[%s3 + $0x2c] sm:$0xf]
  %v343 = vld [vmem:[%s3 + $0x30] sm:$0xf]
  %v344 = vld [vmem:[%s3 + $0x34] sm:$0xf]
  %v345 = vld [vmem:[%s3 + $0x38] sm:$0xf]
  %v346 = vld [vmem:[%s3 + $0x3c] sm:$0xf]
  %v347 = vld [vmem:[%s4] sm:$0x1]
  %v349 = vperm.slane %v347, 0
  %v367 = vunpack.c.l.b16 %v331
  %v368 = vunpack.c.l.b16 %v332
  %v369 = vunpack.c.l.b16 %v333
  %v370 = vunpack.c.l.b16 %v334
  %v371 = vunpack.c.l.b16 %v335
  %v372 = vunpack.c.l.b16 %v336
  %v373 = vunpack.c.l.b16 %v337
  %v374 = vunpack.c.l.b16 %v338
  %v375 = vunpack.c.l.b16 %v339
  %v376 = vunpack.c.l.b16 %v340
  %v377 = vunpack.c.l.b16 %v341
  %v378 = vunpack.c.l.b16 %v342
  %v379 = vunpack.c.l.b16 %v343
  %v380 = vunpack.c.l.b16 %v344
  %v381 = vunpack.c.l.b16 %v345
  %v382 = vunpack.c.l.b16 %v346
  %v383 = vpack.c.b16 %v368, %v367
  %v384 = vpack.c.b16 %v370, %v369
  %v385 = vpack.c.b16 %v372, %v371
  %v386 = vpack.c.b16 %v374, %v373
  %v387 = vpack.c.b16 %v376, %v375
  %v388 = vpack.c.b16 %v378, %v377
  %v389 = vpack.c.b16 %v380, %v379
  %v390 = vpack.c.b16 %v382, %v381
  %399 = vmatpush.bf16.msra.mxu0 %v390
  %400 = vmatpush.bf16.msra.mxu0 %v389
  %401 = vmatpush.bf16.msra.mxu0 %v388
  %402 = vmatpush.bf16.msra.mxu0 %v387
  %403 = vmatpush.bf16.msra.mxu0 %v386
  %404 = vmatpush.bf16.msra.mxu0 %v385
  %405 = vmatpush.bf16.msra.mxu0 %v384
  %406 = vmatpush.bf16.msra.mxu0 %v383
  %407 = vmatmul.bf16.gmra.mxu0 %v315
  %v408 = vpop.f32.mrf.mxu0
  %v409 = vadd.f32 %v349, %v408
  %v410 = vpop.f32.mrf.mxu0
  %v411 = vadd.f32 %v349, %v410
  %412 = vmatmul.bf16.gmra.mxu0 %v316
  %v413 = vpop.f32.mrf.mxu0
  %v414 = vadd.f32 %v349, %v413
  %v415 = vpop.f32.mrf.mxu0
  %v416 = vadd.f32 %v349, %v415
  %417 = vmatmul.bf16.gmra.mxu0 %v317
  %v418 = vpop.f32.mrf.mxu0
  %v419 = vadd.f32 %v349, %v418
  %v420 = vpop.f32.mrf.mxu0
  %v421 = vadd.f32 %v349, %v420
  %422 = vmatmul.bf16.gmra.mxu0 %v318
  %v423 = vpop.f32.mrf.mxu0
  %v424 = vadd.f32 %v349, %v423
  %v425 = vpop.f32.mrf.mxu0
  %v426 = vadd.f32 %v349, %v425
  %427 = vmatmul.bf16.gmra.mxu0 %v319
  %v428 = vpop.f32.mrf.mxu0
  %v429 = vadd.f32 %v349, %v428
  %v430 = vpop.f32.mrf.mxu0
  %v431 = vadd.f32 %v349, %v430
  %432 = vmatmul.bf16.gmra.mxu0 %v320
  %v433 = vpop.f32.mrf.mxu0
  %v434 = vadd.f32 %v349, %v433
  %v435 = vpop.f32.mrf.mxu0
  %v436 = vadd.f32 %v349, %v435
  %437 = vmatmul.bf16.gmra.mxu0 %v321
  %v438 = vpop.f32.mrf.mxu0
  %v439 = vadd.f32 %v349, %v438
  %v440 = vpop.f32.mrf.mxu0
  %v441 = vadd.f32 %v349, %v440
  %442 = vmatmul.bf16.gmra.mxu0 %v322
  %v443 = vpop.f32.mrf.mxu0
  %v444 = vadd.f32 %v349, %v443
  %v445 = vpop.f32.mrf.mxu0
  %v446 = vadd.f32 %v349, %v445
  %447 = vmatmul.bf16.gmra.mxu0 %v323
  %v448 = vpop.f32.mrf.mxu0
  %v449 = vadd.f32 %v349, %v448
  %v450 = vpop.f32.mrf.mxu0
  %v451 = vadd.f32 %v349, %v450
  %452 = vmatmul.bf16.gmra.mxu0 %v324
  %v453 = vpop.f32.mrf.mxu0
  %v454 = vadd.f32 %v349, %v453
  %v455 = vpop.f32.mrf.mxu0
  %v456 = vadd.f32 %v349, %v455
  %457 = vmatmul.bf16.gmra.mxu0 %v325
  %v458 = vpop.f32.mrf.mxu0
  %v459 = vadd.f32 %v349, %v458
  %v460 = vpop.f32.mrf.mxu0
  %v461 = vadd.f32 %v349, %v460
  %462 = vmatmul.bf16.gmra.mxu0 %v326
  %v463 = vpop.f32.mrf.mxu0
  %v464 = vadd.f32 %v349, %v463
  %v465 = vpop.f32.mrf.mxu0
  %v466 = vadd.f32 %v349, %v465
  %467 = vmatmul.bf16.gmra.mxu0 %v327
  %v468 = vpop.f32.mrf.mxu0
  %v469 = vadd.f32 %v349, %v468
  %v470 = vpop.f32.mrf.mxu0
  %v471 = vadd.f32 %v349, %v470
  %472 = vmatmul.bf16.gmra.mxu0 %v328
  %v473 = vpop.f32.mrf.mxu0
  %v474 = vadd.f32 %v349, %v473
  %v475 = vpop.f32.mrf.mxu0
  %v476 = vadd.f32 %v349, %v475
  %477 = vmatmul.bf16.gmra.mxu0 %v329
  %v478 = vpop.f32.mrf.mxu0
  %v479 = vadd.f32 %v349, %v478
  %v480 = vpop.f32.mrf.mxu0
  %v481 = vadd.f32 %v349, %v480
  %482 = vmatmul.bf16.gmra.mxu0 %v330
  %v483 = vpop.f32.mrf.mxu0
  %v484 = vadd.f32 %v349, %v483
  %v485 = vpop.f32.mrf.mxu0
  %v486 = vadd.f32 %v349, %v485
  %487 = vdwg.mxu0
  %488 = vst [vmem:[%s5] sm:$0xff] %v409
  %489 = vst [vmem:[%s5 + $0x8] sm:$0xff] %v411
  %490 = vst [vmem:[%s5 + $0x10] sm:$0xff] %v414
  %491 = vst [vmem:[%s5 + $0x18] sm:$0xff] %v416
  %492 = vst [vmem:[%s5 + $0x20] sm:$0xff] %v419
  %493 = vst [vmem:[%s5 + $0x28] sm:$0xff] %v421
  %494 = vst [vmem:[%s5 + $0x30] sm:$0xff] %v424
  %495 = vst [vmem:[%s5 + $0x38] sm:$0xff] %v426
  %496 = vst [vmem:[%s5 + $0x40] sm:$0xff] %v429
  %497 = vst [vmem:[%s5 + $0x48] sm:$0xff] %v431
  %498 = vst [vmem:[%s5 + $0x50] sm:$0xff] %v434
  %499 = vst [vmem:[%s5 + $0x58] sm:$0xff] %v436
  %500 = vst [vmem:[%s5 + $0x60] sm:$0xff] %v439
  %501 = vst [vmem:[%s5 + $0x68] sm:$0xff] %v441
  %502 = vst [vmem:[%s5 + $0x70] sm:$0xff] %v444
  %503 = vst [vmem:[%s5 + $0x78] sm:$0xff] %v446
  %504 = vst [vmem:[%s5 + $0x80] sm:$0xff] %v449
  %505 = vst [vmem:[%s5 + $0x88] sm:$0xff] %v451
  %506 = vst [vmem:[%s5 + $0x90] sm:$0xff] %v454
  %507 = vst [vmem:[%s5 + $0x98] sm:$0xff] %v456
  %508 = vst [vmem:[%s5 + $0xa0] sm:$0xff] %v459
  %509 = vst [vmem:[%s5 + $0xa8] sm:$0xff] %v461
  %510 = vst [vmem:[%s5 + $0xb0] sm:$0xff] %v464
  %511 = vst [vmem:[%s5 + $0xb8] sm:$0xff] %v466
  %512 = vst [vmem:[%s5 + $0xc0] sm:$0xff] %v469
  %513 = vst [vmem:[%s5 + $0xc8] sm:$0xff] %v471
  %514 = vst [vmem:[%s5 + $0xd0] sm:$0xff] %v474
  %515 = vst [vmem:[%s5 + $0xd8] sm:$0xff] %v476
  %516 = vst [vmem:[%s5 + $0xe0] sm:$0xff] %v479
  %517 = vst [vmem:[%s5 + $0xe8] sm:$0xff] %v481
  %518 = vst [vmem:[%s5 + $0xf0] sm:$0xff] %v484
  %519 = vst [vmem:[%s5 + $0xf8] sm:$0xff] %v486
  // Predicated region
  $region22: #{forward.1} parent=0 // pred_check
    _
  $region23: #{forward.1} parent=0 // pred_check_branch
    %521 = sbr.rel (0) target = $region25
  $region24: #{forward.1} parent=0 // pred_region
    _
  $region25: #{forward.1} parent=0 // pred_fallthru
    _
  // Predicated region
  $region26: #{forward.1} parent=0 // pred_check
    _
  $region27: #{forward.1} parent=0 // pred_check_branch
    %523 = sbr.rel (0) target = $region29
  $region28: #{forward.1} parent=0 // pred_region
    _
  $region29: #{forward.1} parent=0 // pred_fallthru
    _

</llo_original>
